<compile_context>
chip_gen: v7x
topology: tpu7x:2x2x1
jax: 0.10.0
libtpu: 0.0.40
codegen_flags: <defaults>
</compile_context>

<pallas_src>
import jax
import jax.numpy as jnp
from jax import lax
from jax.experimental import pallas as pl
from jax.experimental.pallas import tpu as pltpu

NUM_BITS = 8
QMIN = float(-(2 ** NUM_BITS))            # -256.0 (asymmetric clamp — matches torch code)
QMAX = float(2 ** (NUM_BITS - 1) - 1)     #  127.0


def _fq_scale_from_minmax(mn, mx):
    """scale = 2^(num_bits - 1 - round(log2(max(|max|,|min|)))), guarded against 0."""
    amax = jnp.maximum(jnp.maximum(jnp.abs(mx), jnp.abs(mn)), jnp.float32(1e-30))
    int_bits = jnp.round(jnp.log2(amax))
    return jnp.exp2(jnp.float32(NUM_BITS - 1) - int_bits).astype(jnp.float32)


def _fq_scale(t):
    return _fq_scale_from_minmax(jnp.min(t), jnp.max(t))


# ----------------------------- Pallas kernel ------------------------------

def _make_conv_kernel(*, C, O_pad, KH, KW, Wp, OW, Qf, Qt, n_tiles, stride, dilation):
    """Fused: input fake-quant + merged-K conv GEMM + bias + per-image output min/max."""
    KC = KH * KW * C
    taps = [(kh * Wp + kw) * dilation for kh in range(KH) for kw in range(KW)]

    def kernel(sc_ref, x_ref, w_ref, b_ref, y_ref, mm_ref, slab_ref):
        s_in = sc_ref[0]                  # input scale
        inv = sc_ref[1]                   # 1 / (s_in * s_w)   (power of two -> exact)
        xc = jnp.clip(x_ref[0] * s_in, QMIN, QMAX)             # (C, Lx) scaled + clipped
        w = w_ref[...]                                          # (O_pad, KC)
        b = b_ref[...]                                          # (O_pad, 1)

        run_min = jnp.full((O_pad, 1), jnp.inf, jnp.float32)
        run_max = jnp.full((O_pad, 1), -jnp.inf, jnp.float32)

        for ti in range(n_tiles):                               # lane-aligned Q tiles
            q0 = ti * Qt
            # single copy pass: assemble the (KC, Qt) im2col slab in VMEM scratch
            for t_idx, t in enumerate(taps):
                if stride == 1:
                    piece = xc[:, t + q0: t + q0 + Qt]
                else:
                    piece = xc[:, t + stride * q0:
                               t + stride * q0 + stride * (Qt - 1) + 1: stride]
                slab_ref[t_idx * C:(t_idx + 1) * C, :] = piece
            # one merged-K GEMM (K = KH*KW*C) instead of KH*KW dots with K=C
            acc = jnp.dot(w, slab_ref[...], preferred_element_type=jnp.float32)
            y = acc * inv + b                                   # (O_pad, Qt)
            y_ref[0, :, q0:q0 + Qt] = y

            # fused partial min/max over valid output columns (iota mask, no HBM input)
            col = lax.broadcasted_iota(jnp.int32, (1, Qt), 1) + q0
            colv = ((col % Wp) < OW) & (col < Qf)
            run_min = jnp.minimum(
                run_min, jnp.min(jnp.where(colv, y, jnp.inf), axis=1, keepdims=True))
            run_max = jnp.maximum(
                run_max, jnp.max(jnp.where(colv, y, -jnp.inf), axis=1, keepdims=True))

        mm_ref[0, 0] = run_min
        mm_ref[0, 1] = run_max

    return kernel


# ------------------------------ host wrapper -------------------------------

def qconv2d_forward(x, weight_v, weight_g, bias, *, stride=1, padding=1, dilation=1):
    """QConv2d.forward.  x: (N,C,H,W) f32.  weight_v: (O,C,KH,KW), weight_g: (O,1,1,1)."""
    N, C, H, W = x.shape
    O, _, KH, KW = weight_v.shape

    # weight_norm parametrization (dim=0): w = g * v / ||v||_(1,2,3)
    v_norm = jnp.sqrt(jnp.sum(weight_v * weight_v, axis=(1, 2, 3), keepdims=True))
    weight = weight_g * weight_v / v_norm

    s_in = _fq_scale(x)          # input_param.update(x)
    s_w = _fq_scale(weight)      # weight_param.update(weight)

    Hp, Wp = H + 2 * padding, W + 2 * padding
    OH = (H + 2 * padding - dilation * (KH - 1) - 1) // stride + 1
    OW = (W + 2 * padding - dilation * (KW - 1) - 1) // stride + 1
    Qf = OH * Wp                              # full-width output positions per image
    O_pad = ((O + 7) // 8) * 8                # sublane-align the output channels
    KC = KH * KW * C

    # lane-aligned Q tiling (multiple of 128, capped at 512)
    Qt = min(512, ((Qf + 127) // 128) * 128)
    n_tiles = -(-Qf // Qt)
    Qf_pad = n_tiles * Qt

    # ---- weight fake-quant hoisted; packed for one merged-K GEMM -----------------
    # column order (kh, kw, c) must match the slab assembly order in the kernel.
    w_clip = jnp.clip(weight * s_w, QMIN, QMAX)                        # (O,C,KH,KW)
    w_packed = jnp.transpose(w_clip, (0, 2, 3, 1)).reshape(O, KC)      # (O, KH*KW*C)
    if O_pad != O:
        w_packed = jnp.pad(w_packed, ((0, O_pad - O), (0, 0)))
    w_packed = w_packed.astype(jnp.float32)
    b2 = bias.astype(jnp.float32).reshape(O, 1)
    if O_pad != O:
        b2 = jnp.pad(b2, ((0, O_pad - O), (0, 0)))

    # ---- spatially padded, flattened input (no im2col materialisation in HBM) ----
    xp = jnp.pad(x, ((0, 0), (0, 0), (padding, padding), (padding, padding)))
    xflat = xp.reshape(N, C, Hp * Wp)         # free minor-dim merge
    t_max = dilation * ((KH - 1) * Wp + (KW - 1))
    need = t_max + stride * (Qf_pad - 1) + 1  # keep the largest tap slice in-bounds
    extra = max(need - Hp * Wp, 0)
    if extra:
        xflat = jnp.pad(xflat, ((0, 0), (0, 0), (0, extra)))
    Lx = Hp * Wp + extra

    inv1 = 1.0 / (s_in * s_w)
    scales = jnp.stack([s_in, inv1]).astype(jnp.float32)               # (2,) SMEM

    smem_spec = pl.BlockSpec(memory_space=pltpu.MemorySpace.SMEM)
    # 32 MiB limit is safe on all generations incl. v7x (64 MiB/TC); blocks here are tiny.
    cparams = pltpu.CompilerParams(dimension_semantics=("parallel",),
                                   vmem_limit_bytes=32 * 1024 * 1024)

    conv_kernel = _make_conv_kernel(C=C, O_pad=O_pad, KH=KH, KW=KW, Wp=Wp, OW=OW,
                                    Qf=Qf, Qt=Qt, n_tiles=n_tiles,
                                    stride=stride, dilation=dilation)
    y_full, mm = pl.pallas_call(
        conv_kernel,
        out_shape=(jax.ShapeDtypeStruct((N, O_pad, Qf_pad), jnp.float32),
                   jax.ShapeDtypeStruct((N, 2, O_pad, 1), jnp.float32)),
        grid=(N,),
        in_specs=[
            smem_spec,                                            # [s_in, 1/(s_in*s_w)]
            pl.BlockSpec((1, C, Lx), lambda n: (n, 0, 0)),        # flattened padded x
            pl.BlockSpec((O_pad, KC), lambda n: (0, 0)),          # packed clipped weight
            pl.BlockSpec((O_pad, 1), lambda n: (0, 0)),           # bias
        ],
        out_specs=(pl.BlockSpec((1, O_pad, Qf_pad), lambda n: (n, 0, 0)),
                   pl.BlockSpec((1, 2, O_pad, 1), lambda n: (n, 0, 0, 0))),
        scratch_shapes=[pltpu.VMEM((KC, Qt), jnp.float32)],       # im2col slab
        compiler_params=cparams,
    )(scales, xflat, w_packed, b2)

    # output_param.update(y): reduce only the tiny per-image/per-channel partials
    # (valid O rows only, so no ±inf sentinels reach the reduction).
    s_out = _fq_scale_from_minmax(jnp.min(mm[:, 0, :O]), jnp.max(mm[:, 1, :O]))
    inv_out = 1.0 / s_out                                         # power of two -> exact

    # output fake-quant + crop: 3 elementwise ops + slice, fused by XLA (kernel 2 deleted)
    y = y_full[:, :O, :Qf].reshape(N, O, OH, Wp)[..., :OW]
    out = jnp.clip(y * s_out, QMIN, QMAX) * inv_out
    return out


# ------------------------------ pure-JAX reference ------------------------------

def _reference_forward(x, weight_v, weight_g, bias, *, stride, padding, dilation):
    v_norm = jnp.sqrt(jnp.sum(weight_v * weight_v, axis=(1, 2, 3), keepdims=True))
    weight = weight_g * weight_v / v_norm

    def fq(t):
        s = _fq_scale(t)
        return jnp.clip(t * s, QMIN, QMAX) / s

    xq = fq(x)
    wq = fq(weight)
    y = lax.conv_general_dilated(
        xq, wq, window_strides=(stride, stride),
        padding=[(padding, padding), (padding, padding)],
        rhs_dilation=(dilation, dilation),
        dimension_numbers=("NCHW", "OIHW", "NCHW"))
    y = y + bias.reshape(1, -1, 1, 1)
    return fq(y)


if __name__ == "__main__":
    key = jax.random.PRNGKey(0)
    k1, k2, k3 = jax.random.split(key, 3)

    N, C, H, W = 2, 4, 16, 16
    O, KH, KW = 8, 3, 3
    stride, padding, dilation = 1, 1, 1

    x = jax.random.normal(k1, (N, C, H, W), dtype=jnp.float32)
    weight_v = jax.random.normal(k2, (O, C, KH, KW), dtype=jnp.float32) * 0.1
    # weight_norm init: g = ||v|| over dims (1,2,3)  (effective weight == v initially)
    weight_g = jnp.sqrt(jnp.sum(weight_v * weight_v, axis=(1, 2, 3), keepdims=True))
    bias = jax.random.normal(k3, (O,), dtype=jnp.float32) * 0.1

    y = qconv2d_forward(x, weight_v, weight_g, bias,
                        stride=stride, padding=padding, dilation=dilation)
    y = jax.block_until_ready(y)

    y_ref = _reference_forward(x, weight_v, weight_g, bias,
                               stride=stride, padding=padding, dilation=dilation)
    assert y.shape == (N, O, H, W), y.shape
    assert bool(jnp.all(jnp.isfinite(y)))
    err = float(jnp.max(jnp.abs(y - y_ref)))
    assert err < 1e-3, err

    print("KERNEL_OK")
</pallas_src>

<mosaic_0001>
module attributes {stable_mosaic.version = 11 : i64} {
  func.func @kernel(%arg0: i32, %arg1: memref<2xf32, #tpu.memory_space<smem>>, %arg2: memref<1x4x422xf32, #tpu.memory_space<vmem>>, %arg3: memref<8x36xf32, #tpu.memory_space<vmem>>, %arg4: memref<8x1xf32, #tpu.memory_space<vmem>>, %arg5: memref<1x8x384xf32, #tpu.memory_space<vmem>>, %arg6: memref<1x2x8x1xf32, #tpu.memory_space<vmem>>, %arg7: memref<36x384xf32, #tpu.memory_space<vmem>>) attributes {dimension_semantics = [#tpu.dimension_semantics<parallel>], iteration_bounds = array<i64: 2>, scalar_prefetch = 0 : i64, scratch_operands = 1 : i64, tpu.core_type = #tpu.core_type<tc>, window_params = [{transform_indices = @transform_0, window_bounds = array<i64: 2>}, {transform_indices = @transform_1, window_bounds = array<i64: 1, 4, 422>}, {pipeline_mode = #tpu.pipeline_mode<synchronous>, transform_indices = @transform_2, window_bounds = array<i64: 8, 36>}, {pipeline_mode = #tpu.pipeline_mode<synchronous>, transform_indices = @transform_3, window_bounds = array<i64: 8, 1>}, {transform_indices = @transform_4, window_bounds = array<i64: 1, 8, 384>}, {transform_indices = @transform_5, window_bounds = array<i64: 1, 2, 8, 1>}]} {
    %c0 = arith.constant 0 : index
    %0 = memref.load %arg1[%c0] : memref<2xf32, #tpu.memory_space<smem>>
    %c1 = arith.constant 1 : index
    %1 = memref.load %arg1[%c1] : memref<2xf32, #tpu.memory_space<smem>>
    %c0_0 = arith.constant 0 : index
    %c0_1 = arith.constant 0 : index
    %c0_2 = arith.constant 0 : index
    %2 = vector.load %arg2[%c0_0, %c0_1, %c0_2] : memref<1x4x422xf32, #tpu.memory_space<vmem>>, vector<1x4x422xf32>
    %3 = vector.shape_cast %2 : vector<1x4x422xf32> to vector<4x422xf32>
    %4 = vector.broadcast %0 : f32 to vector<4x422xf32>
    %5 = arith.mulf %3, %4 : vector<4x422xf32>
    %cst = arith.constant -2.560000e+02 : f32
    %cst_3 = arith.constant 1.270000e+02 : f32
    %6 = vector.broadcast %cst : f32 to vector<4x422xf32>
    %7 = arith.maximumf %6, %5 : vector<4x422xf32>
    %8 = vector.broadcast %cst_3 : f32 to vector<4x422xf32>
    %9 = arith.minimumf %8, %7 : vector<4x422xf32>
    %c0_4 = arith.constant 0 : index
    %c0_5 = arith.constant 0 : index
    %10 = vector.load %arg3[%c0_4, %c0_5] : memref<8x36xf32, #tpu.memory_space<vmem>>, vector<8x36xf32>
    %c0_6 = arith.constant 0 : index
    %c0_7 = arith.constant 0 : index
    %11 = vector.load %arg4[%c0_6, %c0_7] : memref<8x1xf32, #tpu.memory_space<vmem>>, vector<8x1xf32>
    %cst_8 = arith.constant 0x7F800000 : f32
    %12 = vector.broadcast %cst_8 : f32 to vector<8x1xf32>
    %cst_9 = arith.constant 0xFF800000 : f32
    %13 = vector.broadcast %cst_9 : f32 to vector<8x1xf32>
    %14 = vector.extract_strided_slice %9 {offsets = [0, 0], sizes = [4, 384], strides = [1, 1]} : vector<4x422xf32> to vector<4x384xf32>
    %c0_10 = arith.constant 0 : index
    %c0_11 = arith.constant 0 : index
    %15 = vector.load %arg7[%c0_10, %c0_11] : memref<36x384xf32, #tpu.memory_space<vmem>>, vector<4x384xf32>
    tpu.vector_store %arg7[%c0_10, %c0_11], %14 {strides = array<i32>} : memref<36x384xf32, #tpu.memory_space<vmem>>, vector<4x384xf32>,
    %16 = vector.extract_strided_slice %9 {offsets = [0, 1], sizes = [4, 384], strides = [1, 1]} : vector<4x422xf32> to vector<4x384xf32>
    %c4 = arith.constant 4 : index
    %c0_12 = arith.constant 0 : index
    %17 = vector.load %arg7[%c4, %c0_12] : memref<36x384xf32, #tpu.memory_space<vmem>>, vector<4x384xf32>
    tpu.vector_store %arg7[%c4, %c0_12], %16 {strides = array<i32>} : memref<36x384xf32, #tpu.memory_space<vmem>>, vector<4x384xf32>,
    %18 = vector.extract_strided_slice %9 {offsets = [0, 2], sizes = [4, 384], strides = [1, 1]} : vector<4x422xf32> to vector<4x384xf32>
    %c8 = arith.constant 8 : index
    %c0_13 = arith.constant 0 : index
    %19 = vector.load %arg7[%c8, %c0_13] : memref<36x384xf32, #tpu.memory_space<vmem>>, vector<4x384xf32>
    tpu.vector_store %arg7[%c8, %c0_13], %18 {strides = array<i32>} : memref<36x384xf32, #tpu.memory_space<vmem>>, vector<4x384xf32>,
    %20 = vector.extract_strided_slice %9 {offsets = [0, 18], sizes = [4, 384], strides = [1, 1]} : vector<4x422xf32> to vector<4x384xf32>
    %c12 = arith.constant 12 : index
    %c0_14 = arith.constant 0 : index
    %21 = vector.load %arg7[%c12, %c0_14] : memref<36x384xf32, #tpu.memory_space<vmem>>, vector<4x384xf32>
    tpu.vector_store %arg7[%c12, %c0_14], %20 {strides = array<i32>} : memref<36x384xf32, #tpu.memory_space<vmem>>, vector<4x384xf32>,
    %22 = vector.extract_strided_slice %9 {offsets = [0, 19], sizes = [4, 384], strides = [1, 1]} : vector<4x422xf32> to vector<4x384xf32>
    %c16 = arith.constant 16 : index
    %c0_15 = arith.constant 0 : index
    %23 = vector.load %arg7[%c16, %c0_15] : memref<36x384xf32, #tpu.memory_space<vmem>>, vector<4x384xf32>
    tpu.vector_store %arg7[%c16, %c0_15], %22 {strides = array<i32>} : memref<36x384xf32, #tpu.memory_space<vmem>>, vector<4x384xf32>,
    %24 = vector.extract_strided_slice %9 {offsets = [0, 20], sizes = [4, 384], strides = [1, 1]} : vector<4x422xf32> to vector<4x384xf32>
    %c20 = arith.constant 20 : index
    %c0_16 = arith.constant 0 : index
    %25 = vector.load %arg7[%c20, %c0_16] : memref<36x384xf32, #tpu.memory_space<vmem>>, vector<4x384xf32>
    tpu.vector_store %arg7[%c20, %c0_16], %24 {strides = array<i32>} : memref<36x384xf32, #tpu.memory_space<vmem>>, vector<4x384xf32>,
    %26 = vector.extract_strided_slice %9 {offsets = [0, 36], sizes = [4, 384], strides = [1, 1]} : vector<4x422xf32> to vector<4x384xf32>
    %c24 = arith.constant 24 : index
    %c0_17 = arith.constant 0 : index
    %27 = vector.load %arg7[%c24, %c0_17] : memref<36x384xf32, #tpu.memory_space<vmem>>, vector<4x384xf32>
    tpu.vector_store %arg7[%c24, %c0_17], %26 {strides = array<i32>} : memref<36x384xf32, #tpu.memory_space<vmem>>, vector<4x384xf32>,
    %28 = vector.extract_strided_slice %9 {offsets = [0, 37], sizes = [4, 384], strides = [1, 1]} : vector<4x422xf32> to vector<4x384xf32>
    %c28 = arith.constant 28 : index
    %c0_18 = arith.constant 0 : index
    %29 = vector.load %arg7[%c28, %c0_18] : memref<36x384xf32, #tpu.memory_space<vmem>>, vector<4x384xf32>
    tpu.vector_store %arg7[%c28, %c0_18], %28 {strides = array<i32>} : memref<36x384xf32, #tpu.memory_space<vmem>>, vector<4x384xf32>,
    %30 = vector.extract_strided_slice %9 {offsets = [0, 38], sizes = [4, 384], strides = [1, 1]} : vector<4x422xf32> to vector<4x384xf32>
    %c32 = arith.constant 32 : index
    %c0_19 = arith.constant 0 : index
    %31 = vector.load %arg7[%c32, %c0_19] : memref<36x384xf32, #tpu.memory_space<vmem>>, vector<4x384xf32>
    tpu.vector_store %arg7[%c32, %c0_19], %30 {strides = array<i32>} : memref<36x384xf32, #tpu.memory_space<vmem>>, vector<4x384xf32>,
    %c0_20 = arith.constant 0 : index
    %c0_21 = arith.constant 0 : index
    %32 = vector.load %arg7[%c0_20, %c0_21] : memref<36x384xf32, #tpu.memory_space<vmem>>, vector<36x384xf32>
    %cst_22 = arith.constant dense<0.000000e+00> : vector<8x384xf32>
    %33 = tpu.matmul %10, %32, %cst_22 {dimension_numbers = #tpu.dot_dimension_numbers<[1], [0], [0], [1], [0, 0, 1, 1], [], []>} : vector<8x36xf32>, vector<36x384xf32>, vector<8x384xf32> -> vector<8x384xf32>
    %34 = vector.broadcast %1 : f32 to vector<8x384xf32>
    %35 = arith.mulf %33, %34 : vector<8x384xf32>
    %36 = vector.broadcast %11 : vector<8x1xf32> to vector<8x384xf32>
    %37 = arith.addf %35, %36 : vector<8x384xf32>
    %c0_23 = arith.constant 0 : index
    %c0_24 = arith.constant 0 : index
    %c0_25 = arith.constant 0 : index
    %38 = vector.load %arg5[%c0_23, %c0_24, %c0_25] : memref<1x8x384xf32, #tpu.memory_space<vmem>>, vector<1x8x384xf32>
    %39 = vector.shape_cast %38 : vector<1x8x384xf32> to vector<8x384xf32>
    %40 = vector.shape_cast %37 : vector<8x384xf32> to vector<1x8x384xf32>
    tpu.vector_store %arg5[%c0_23, %c0_24, %c0_25], %40 {strides = array<i32>} : memref<1x8x384xf32, #tpu.memory_space<vmem>>, vector<1x8x384xf32>,
    %41 = tpu.iota {dimensions = array<i32: 1>} : vector<1x384xi32>
    %c0_i32 = arith.constant 0 : i32
    %42 = vector.broadcast %c0_i32 : i32 to vector<1x384xi32>
    %43 = arith.addi %41, %42 : vector<1x384xi32>
    %c18_i32 = arith.constant 18 : i32
    %c0_i32_26 = arith.constant 0 : i32
    %44 = arith.cmpi eq, %c18_i32, %c0_i32_26 : i32
    %c1_i32 = arith.constant 1 : i32
    %45 = arith.select %44, %c1_i32, %c18_i32 : i32
    %46 = vector.broadcast %45 : i32 to vector<1x384xi32>
    %47 = arith.remsi %43, %46 : vector<1x384xi32>
    %c0_i32_27 = arith.constant 0 : i32
    %48 = vector.broadcast %c0_i32_27 : i32 to vector<1x384xi32>
    %49 = arith.cmpi ne, %47, %48 : vector<1x384xi32>
    %c0_i32_28 = arith.constant 0 : i32
    %50 = vector.broadcast %c0_i32_28 : i32 to vector<1x384xi32>
    %51 = arith.cmpi slt, %47, %50 : vector<1x384xi32>
    %c0_i32_29 = arith.constant 0 : i32
    %52 = arith.cmpi slt, %45, %c0_i32_29 : i32
    %53 = vector.broadcast %52 : i1 to vector<1x384xi1>
    %54 = vector.broadcast %53 : vector<1x384xi1> to vector<1x384xi1>
    %55 = arith.xori %51, %54 : vector<1x384xi1>
    %56 = arith.andi %55, %49 : vector<1x384xi1>
    %57 = vector.broadcast %45 : i32 to vector<1x384xi32>
    %58 = arith.addi %47, %57 : vector<1x384xi32>
    %59 = arith.select %56, %58, %47 : vector<1x384xi1>, vector<1x384xi32>
    %c16_i32 = arith.constant 16 : i32
    %60 = vector.broadcast %c16_i32 : i32 to vector<1x384xi32>
    %61 = arith.cmpi slt, %59, %60 : vector<1x384xi32>
    %c288_i32 = arith.constant 288 : i32
    %62 = vector.broadcast %c288_i32 : i32 to vector<1x384xi32>
    %63 = arith.cmpi slt, %43, %62 : vector<1x384xi32>
    %64 = arith.andi %61, %63 : vector<1x384xi1>
    %cst_30 = arith.constant 0x7F800000 : f32
    %65 = vector.shape_cast %64 : vector<1x384xi1> to vector<1x384xi1>
    %66 = vector.broadcast %65 : vector<1x384xi1> to vector<8x384xi1>
    %67 = vector.broadcast %cst_30 : f32 to vector<8x384xf32>
    %68 = arith.select %66, %37, %67 : vector<8x384xi1>, vector<8x384xf32>
    %cst_31 = arith.constant dense<0x7F800000> : vector<8xf32>
    %69 = vector.multi_reduction <minimumf>, %68, %cst_31 [1] : vector<8x384xf32> to vector<8xf32>
    %70 = vector.shape_cast %69 : vector<8xf32> to vector<8x1xf32>
    %71 = arith.minimumf %12, %70 : vector<8x1xf32>
    %cst_32 = arith.constant 0xFF800000 : f32
    %72 = vector.shape_cast %64 : vector<1x384xi1> to vector<1x384xi1>
    %73 = vector.broadcast %72 : vector<1x384xi1> to vector<8x384xi1>
    %74 = vector.broadcast %cst_32 : f32 to vector<8x384xf32>
    %75 = arith.select %73, %37, %74 : vector<8x384xi1>, vector<8x384xf32>
    %cst_33 = arith.constant dense<0xFF800000> : vector<8xf32>
    %76 = vector.multi_reduction <maximumf>, %75, %cst_33 [1] : vector<8x384xf32> to vector<8xf32>
    %77 = vector.shape_cast %76 : vector<8xf32> to vector<8x1xf32>
    %78 = arith.maximumf %13, %77 : vector<8x1xf32>
    %c0_34 = arith.constant 0 : index
    %c0_35 = arith.constant 0 : index
    %c0_36 = arith.constant 0 : index
    %c0_37 = arith.constant 0 : index
    %79 = vector.load %arg6[%c0_34, %c0_35, %c0_36, %c0_37] : memref<1x2x8x1xf32, #tpu.memory_space<vmem>>, vector<1x1x8x1xf32>
    %80 = vector.shape_cast %79 : vector<1x1x8x1xf32> to vector<8x1xf32>
    %81 = vector.shape_cast %71 : vector<8x1xf32> to vector<1x1x8x1xf32>
    tpu.vector_store %arg6[%c0_34, %c0_35, %c0_36, %c0_37], %81 {strides = array<i32>} : memref<1x2x8x1xf32, #tpu.memory_space<vmem>>, vector<1x1x8x1xf32>,
    %c0_38 = arith.constant 0 : index
    %c1_39 = arith.constant 1 : index
    %c0_40 = arith.constant 0 : index
    %c0_41 = arith.constant 0 : index
    %82 = vector.load %arg6[%c0_38, %c1_39, %c0_40, %c0_41] : memref<1x2x8x1xf32, #tpu.memory_space<vmem>>, vector<1x1x8x1xf32>
    %83 = vector.shape_cast %82 : vector<1x1x8x1xf32> to vector<8x1xf32>
    %84 = vector.shape_cast %78 : vector<8x1xf32> to vector<1x1x8x1xf32>
    tpu.vector_store %arg6[%c0_38, %c1_39, %c0_40, %c0_41], %84 {strides = array<i32>} : memref<1x2x8x1xf32, #tpu.memory_space<vmem>>, vector<1x1x8x1xf32>,
    return
  }
  func.func @transform_0(%arg0: i32) -> i32 {
    %c0_i32 = arith.constant 0 : i32
    %c0_i32_0 = arith.constant 0 : i32
    return %c0_i32 : i32
  }
  func.func @transform_1(%arg0: i32) -> (i32, i32, i32) {
    %c0_i32 = arith.constant 0 : i32
    %c0_i32_0 = arith.constant 0 : i32
    %c0_i32_1 = arith.constant 0 : i32
    return %arg0, %c0_i32, %c0_i32_0 : i32, i32, i32
  }
  func.func @transform_2(%arg0: i32) -> (i32, i32) {
    %c0_i32 = arith.constant 0 : i32
    %c0_i32_0 = arith.constant 0 : i32
    %c0_i32_1 = arith.constant 0 : i32
    return %c0_i32, %c0_i32_0 : i32, i32
  }
  func.func @transform_3(%arg0: i32) -> (i32, i32) {
    %c0_i32 = arith.constant 0 : i32
    %c0_i32_0 = arith.constant 0 : i32
    %c0_i32_1 = arith.constant 0 : i32
    return %c0_i32, %c0_i32_0 : i32, i32
  }
  func.func @transform_4(%arg0: i32) -> (i32, i32, i32) {
    %c0_i32 = arith.constant 0 : i32
    %c0_i32_0 = arith.constant 0 : i32
    %c0_i32_1 = arith.constant 0 : i32
    return %arg0, %c0_i32, %c0_i32_0 : i32, i32, i32
  }
  func.func @transform_5(%arg0: i32) -> (i32, i32, i32, i32) {
    %c0_i32 = arith.constant 0 : i32
    %c0_i32_0 = arith.constant 0 : i32
    %c0_i32_1 = arith.constant 0 : i32
    %c0_i32_2 = arith.constant 0 : i32
    return %arg0, %c0_i32, %c0_i32_0, %c0_i32_1 : i32, i32, i32, i32
  }
}

</mosaic_0001>

<llo_original>
// kernel: tpu_custom_call.1
$region0: #{tpu_custom_call.1}
  #allocation0 [shape = 'u32[]', space=smem, size = 0x4, offset = 0x4, fixed_abs, tag = 'smem constant byte address 0x4 - core index']
  #allocation1 [shape = 'u32[144,128]{1,0:T(1,128)}', space=vmem, size = 0x12000, scoped, tag = 'internal scratch']
  #allocation2 [shape = 'f32[36,384]{1,0:T(8,128)}', space=vmem, size = 0xf000, scoped, tag = 'scratch operand']
  %s0 = inlined_call_operand.vmem [shape: f32[2], index: 0, kind: input, shape index: {}]
  %s1 = inlined_call_operand.hbm [shape: f32[2,4,422], index: 1, kind: input, shape index: {}]
  %s2 = inlined_call_operand.vmem [shape: f32[8,36], index: 2, kind: input, shape index: {}]
  %s3 = inlined_call_operand.vmem [shape: f32[8,1], index: 3, kind: input, shape index: {}]
  %s4 = inlined_call_operand.hbm [shape: f32[2,8,384], index: 4, kind: output, shape index: {0}]
  %s5 = inlined_call_operand.vmem [shape: f32[2,2,8,1], index: 5, kind: output, shape index: {1}]
  %6 = xla_tuple %s4, %s5
  %s7 = sld [smem:[#allocation0]]
  $region65: #{tpu_custom_call.1} parent=0
    _
  %s9 = ssub.s32 1, %s7
  %s10 = scalar_select 0, %s9, %s7
  $region1: #{tpu_custom_call.1} parent=0
    #allocation3 [shape = 'u8[512]{0}', space=smem, size = 0x200, scoped, tag = 'input window, operand 0, single buffered']
    #allocation4 [shape = 's32[2]{0}', space=sflag, size = 0x8, scoped, tag = 'scoped memory for tpu_custom_call.1']
    #allocation5 [shape = 's32[2]{0}', space=sflag, size = 0x8, scoped, tag = 'scoped memory for tpu_custom_call.1']
    #allocation6 [shape = 's32[2]{0}', space=sflag, size = 0x8, scoped, tag = 'scoped memory for tpu_custom_call.1']
    #allocation7 [shape = 'u8[16384]{0}', space=vmem, size = 0x4000, scoped, tag = 'input window, operand 1']
    #allocation8 [shape = 'u8[24576]{0}', space=vmem, size = 0x6000, scoped, tag = 'output window, operand 0']
    %11 = vsyncpa [#allocation6], 0
    %12 = vsyncpa [#allocation4], 0
    %s13 = scalar_lea.sflag [#allocation4], 1
    %14 = vsyncpa %s13, 0
    %15 = vsyncpa [#allocation5], 0
    %s16 = scalar_lea.sflag [#allocation5], 1
    %17 = vsyncpa %s16, 0
    loop: start=0, step=1, limit=4
    $region2: #{tpu_custom_call.1} parent=1 // loop_pre_header
      _
    $region3: #{tpu_custom_call.1} parent=1 // loop_header
      %s19 = sphi 0, %s23
      %p20 = scmp.ge.s32.totalorder %s19, 4
      %s27 = sphi 0, %s27
      %s29 = sphi 0, %s27
      %s30 = sphi 0, %s29
      %s44 = sphi 0, %s30
      %s50 = sphi 0, %s52
      %s53 = sphi 0, %s50
      %s54 = sphi 0, %s53
      %s70 = sphi 0, %s54
      %s74 = sphi 0, %s74
      %s76 = sphi 0, %s74
      %s77 = sphi 0, %s76
      %s91 = sphi 0, %s77
      %s95 = sphi 0, %s95
      %s97 = sphi 0, %s95
      %s98 = sphi 0, %s97
      %s112 = sphi 0, %s98
      %s118 = sphi 0, %s120
      %s121 = sphi 0, %s118
      %s122 = sphi 0, %s121
      %s138 = sphi 0, %s122
      %s144 = sphi 0, %s146
      %s147 = sphi 0, %s144
      %s148 = sphi 0, %s147
      %s164 = sphi 0, %s148
    $region4: #{tpu_custom_call.1} parent=1 // loop_header_branch
      %22 = sbr.rel (%p20) target = $region8
    $region5: #{tpu_custom_call.1} parent=1 // loop_body
      %s24 = ssub.s32 %s19, 1
      %s25 = ssub.s32 %s19, 2
      %s26 = sadd.s32 %s19, 1
      %s28 = sadd.s32 %s27, 1
      %p31 = scmp.eq.s32.totalorder %s19, 1
      %p32 = scmp.ne.s32.totalorder %s27, %s29
      %p33 = scmp.eq.s32.totalorder %s19, 0
      %p34 = por %p32, %p33
      %p35 = scmp.ne.s32.totalorder %s27, %s29
      %p36 = scmp.eq.s32.totalorder %s24, 1
      %p37 = por %p35, %p36
      %p38 = scmp.ne.s32.totalorder %s29, %s30
      %p39 = scmp.eq.s32.totalorder %s24, 0
      %p40 = por %p38, %p39
      %p41 = scmp.ne.s32.totalorder %s29, %s30
      %p42 = scmp.eq.s32.totalorder %s25, 1
      %p43 = por %p41, %p42
      %p45 = scmp.ne.s32.totalorder %s30, %s44
      %p46 = scmp.eq.s32.totalorder %s25, 0
      %p47 = por %p45, %p46
      %s48 = ssub.s32 %s19, %s26
      %p49 = scmp.eq.s32.totalorder %s48, 0
      %s51 = sadd.s32 %s50, 1
      %s52 = scalar_select %p49, %s50, %s51
      %p55 = pneg %p49
      %p56 = scmp.eq.s32.totalorder %s19, 1
      %p57 = por %p55, %p56
      %p58 = scmp.ne.s32.totalorder %s50, %s53
      %p59 = scmp.eq.s32.totalorder %s19, 0
      %p60 = por %p58, %p59
      %p61 = scmp.ne.s32.totalorder %s50, %s53
      %p62 = scmp.eq.s32.totalorder %s24, 1
      %p63 = por %p61, %p62
      %p64 = scmp.ne.s32.totalorder %s53, %s54
      %p65 = scmp.eq.s32.totalorder %s24, 0
      %p66 = por %p64, %p65
      %p67 = scmp.ne.s32.totalorder %s53, %s54
      %p68 = scmp.eq.s32.totalorder %s25, 1
      %p69 = por %p67, %p68
      %p71 = scmp.ne.s32.totalorder %s54, %s70
      %p72 = scmp.eq.s32.totalorder %s25, 0
      %p73 = por %p71, %p72
      %s75 = sadd.s32 %s74, 1
      %p78 = scmp.eq.s32.totalorder %s19, 1
      %p79 = scmp.ne.s32.totalorder %s74, %s76
      %p80 = scmp.eq.s32.totalorder %s19, 0
      %p81 = por %p79, %p80
      %p82 = scmp.ne.s32.totalorder %s74, %s76
      %p83 = scmp.eq.s32.totalorder %s24, 1
      %p84 = por %p82, %p83
      %p85 = scmp.ne.s32.totalorder %s76, %s77
      %p86 = scmp.eq.s32.totalorder %s24, 0
      %p87 = por %p85, %p86
      %p88 = scmp.ne.s32.totalorder %s76, %s77
      %p89 = scmp.eq.s32.totalorder %s25, 1
      %p90 = por %p88, %p89
      %p92 = scmp.ne.s32.totalorder %s77, %s91
      %p93 = scmp.eq.s32.totalorder %s25, 0
      %p94 = por %p92, %p93
      %s96 = sadd.s32 %s95, 1
      %p99 = scmp.eq.s32.totalorder %s19, 1
      %p100 = scmp.ne.s32.totalorder %s95, %s97
      %p101 = scmp.eq.s32.totalorder %s19, 0
      %p102 = por %p100, %p101
      %p103 = scmp.ne.s32.totalorder %s95, %s97
      %p104 = scmp.eq.s32.totalorder %s24, 1
      %p105 = por %p103, %p104
      %p106 = scmp.ne.s32.totalorder %s97, %s98
      %p107 = scmp.eq.s32.totalorder %s24, 0
      %p108 = por %p106, %p107
      %p109 = scmp.ne.s32.totalorder %s97, %s98
      %p110 = scmp.eq.s32.totalorder %s25, 1
      %p111 = por %p109, %p110
      %p113 = scmp.ne.s32.totalorder %s98, %s112
      %p114 = scmp.eq.s32.totalorder %s25, 0
      %p115 = por %p113, %p114
      %s116 = ssub.s32 %s19, %s26
      %p117 = scmp.eq.s32.totalorder %s116, 0
      %s119 = sadd.s32 %s118, 1
      %s120 = scalar_select %p117, %s118, %s119
      %p123 = pneg %p117
      %p124 = scmp.eq.s32.totalorder %s19, 1
      %p125 = por %p123, %p124
      %p126 = scmp.ne.s32.totalorder %s118, %s121
      %p127 = scmp.eq.s32.totalorder %s19, 0
      %p128 = por %p126, %p127
      %p129 = scmp.ne.s32.totalorder %s118, %s121
      %p130 = scmp.eq.s32.totalorder %s24, 1
      %p131 = por %p129, %p130
      %p132 = scmp.ne.s32.totalorder %s121, %s122
      %p133 = scmp.eq.s32.totalorder %s24, 0
      %p134 = por %p132, %p133
      %p135 = scmp.ne.s32.totalorder %s121, %s122
      %p136 = scmp.eq.s32.totalorder %s25, 1
      %p137 = por %p135, %p136
      %p139 = scmp.ne.s32.totalorder %s122, %s138
      %p140 = scmp.eq.s32.totalorder %s25, 0
      %p141 = por %p139, %p140
      %s142 = ssub.s32 %s19, %s26
      %p143 = scmp.eq.s32.totalorder %s142, 0
      %s145 = sadd.s32 %s144, 1
      %s146 = scalar_select %p143, %s144, %s145
      %p149 = pneg %p143
      %p150 = scmp.eq.s32.totalorder %s19, 1
      %p151 = por %p149, %p150
      %p152 = scmp.ne.s32.totalorder %s144, %s147
      %p153 = scmp.eq.s32.totalorder %s19, 0
      %p154 = por %p152, %p153
      %p155 = scmp.ne.s32.totalorder %s144, %s147
      %p156 = scmp.eq.s32.totalorder %s24, 1
      %p157 = por %p155, %p156
      %p158 = scmp.ne.s32.totalorder %s147, %s148
      %p159 = scmp.eq.s32.totalorder %s24, 0
      %p160 = por %p158, %p159
      %p161 = scmp.ne.s32.totalorder %s147, %s148
      %p162 = scmp.eq.s32.totalorder %s25, 1
      %p163 = por %p161, %p162
      %p165 = scmp.ne.s32.totalorder %s148, %s164
      %p166 = scmp.eq.s32.totalorder %s25, 0
      %p167 = por %p165, %p166
      %p168 = scmp.le.s32.totalorder 1, %s19
      %p169 = scmp.lt.s32.totalorder %s19, 3
      %p170 = pnand %p168, %p169
      %p171 = pneg %p170
      // Predicated region
      $region9: #{tpu_custom_call.1} parent=5 // pred_check
        _
      $region10: #{tpu_custom_call.1} parent=5 // pred_check_branch
        %173 = sbr.rel (%p170) target = $region12
      $region11: #{tpu_custom_call.1} parent=5 // pred_region
        %s174 = ssub.s32 %s19, 1
        // Predicated region
        $region13: #{tpu_custom_call.1} parent=11 // pred_check
          %p175 = pneg %p40
        $region14: #{tpu_custom_call.1} parent=11 // pred_check_branch
          %177 = sbr.rel (%p175) target = $region16
        $region15: #{tpu_custom_call.1} parent=11 // pred_region
          %s179 = ssub.s32 16, 16
          %180 = vsyncadd [#allocation6], %s179
          %s182 = sshll.u32 %s0, 4
          %s183 = int_to_ptr.vmem [resolvable:$true] %s182
          %185 = dma.vmem_to_smem %s183, 16, [#allocation3], [#allocation6]
        $region16: #{tpu_custom_call.1} parent=11 // pred_fallthru
          _
        // Predicated region
        $region17: #{tpu_custom_call.1} parent=11 // pred_check
          %p186 = pneg %p87
        $region18: #{tpu_custom_call.1} parent=11 // pred_check_branch
          %188 = sbr.rel (%p186) target = $region20
        $region19: #{tpu_custom_call.1} parent=11 // pred_region
          _
        $region20: #{tpu_custom_call.1} parent=11 // pred_fallthru
          _
        // Predicated region
        $region21: #{tpu_custom_call.1} parent=11 // pred_check
          %p189 = pneg %p108
        $region22: #{tpu_custom_call.1} parent=11 // pred_check_branch
          %191 = sbr.rel (%p189) target = $region24
        $region23: #{tpu_custom_call.1} parent=11 // pred_region
          _
        $region24: #{tpu_custom_call.1} parent=11 // pred_fallthru
          _
      $region12: #{tpu_custom_call.1} parent=5 // pred_fallthru
        _
      %p192 = scmp.lt.s32.totalorder %s19, 2
      // Predicated region
      $region25: #{tpu_custom_call.1} parent=5 // pred_check
        %p193 = pneg %p192
      $region26: #{tpu_custom_call.1} parent=5 // pred_check_branch
        %195 = sbr.rel (%p193) target = $region28
      $region27: #{tpu_custom_call.1} parent=5 // pred_region
        // Predicated region
        $region29: #{tpu_custom_call.1} parent=27 // pred_check
          %p196 = pneg %p60
        $region30: #{tpu_custom_call.1} parent=27 // pred_check_branch
          %198 = sbr.rel (%p196) target = $region32
        $region31: #{tpu_custom_call.1} parent=27 // pred_region
          %s199 = sand.u32 %s50, 1
          %s200 = scalar_lea.sflag [#allocation4], %s199
          %s201 = sand.u32 %s50, 1
          %s202 = smul.addr %s201, 16
          %s203 = scalar_lea.vmem [#allocation7], %s202
          %s205 = ssub.s32 256, 256
          %206 = vsyncadd %s200, %s205
          %s207 = smul.addr %s19, 4
          %s208 = smul.addr %s207, 64
          %s209 = scalar_lea.hbm %s1, %s208
          %s211 = sshll.u32 %s203, 4
          %s212 = int_to_ptr.vmem [resolvable:$true] %s211
          %214 = dma.hbm_to_vmem [thread:$0]  %s209, 256, %s212, %s200
        $region32: #{tpu_custom_call.1} parent=27 // pred_fallthru
          _
      $region28: #{tpu_custom_call.1} parent=5 // pred_fallthru
        _
      %p215 = scmp.le.s32.totalorder 1, %s19
      %p216 = scmp.lt.s32.totalorder %s19, 3
      %p217 = pnand %p215, %p216
      %p218 = pneg %p217
      // Predicated region
      $region33: #{tpu_custom_call.1} parent=5 // pred_check
        _
      $region34: #{tpu_custom_call.1} parent=5 // pred_check_branch
        %220 = sbr.rel (%p217) target = $region36
      $region35: #{tpu_custom_call.1} parent=5 // pred_region
        %s221 = ssub.s32 %s19, 1
        // Predicated region
        $region37: #{tpu_custom_call.1} parent=35 // pred_check
          %p222 = pneg %p40
        $region38: #{tpu_custom_call.1} parent=35 // pred_check_branch
          %224 = sbr.rel (%p222) target = $region40
        $region39: #{tpu_custom_call.1} parent=35 // pred_region
          %225 = dma.done [#allocation6], 16
        $region40: #{tpu_custom_call.1} parent=35 // pred_fallthru
          _
        %s226 = sand.u32 %s53, 1
        %s227 = scalar_lea.sflag [#allocation4], %s226
        %s228 = sand.u32 %s53, 1
        %s229 = smul.addr %s228, 16
        %s230 = scalar_lea.vmem [#allocation7], %s229
        // Predicated region
        $region41: #{tpu_custom_call.1} parent=35 // pred_check
          %p231 = pneg %p66
        $region42: #{tpu_custom_call.1} parent=35 // pred_check_branch
          %233 = sbr.rel (%p231) target = $region44
        $region43: #{tpu_custom_call.1} parent=35 // pred_region
          %234 = dma.done %s227, 256
        $region44: #{tpu_custom_call.1} parent=35 // pred_fallthru
          _
        %235 = sfence
        %p236 = pneg %p40
        %p237 = pneg %p37
        %s238 = sand.u32 %s53, 1
        %s239 = scalar_lea.sflag [#allocation4], %s238
        %s240 = sand.u32 %s53, 1
        %s241 = smul.addr %s240, 16
        %s242 = scalar_lea.vmem [#allocation7], %s241
        %p243 = pneg %p66
        %p244 = pneg %p63
        %p245 = pneg %p87
        %p246 = pneg %p84
        %p247 = pneg %p108
        %p248 = pneg %p105
        %p249 = pneg %p134
        %p250 = pneg %p131
        %s251 = sand.u32 %s121, 1
        %s252 = scalar_lea.sflag [#allocation5], %s251
        %s253 = sand.u32 %s121, 1
        %s254 = smul.addr %s253, 24
        %s255 = scalar_lea.vmem [#allocation8], %s254
        %p256 = pneg %p160
        %p257 = pneg %p157
        %p258 = scmp.lt.s32.totalorder %s24, 1
        %s259 = scalar_select %p258, %s24, 1
        %s260 = smul.addr %s259, 2
        %s261 = smul.addr %s260, 8
        %s262 = scalar_lea.vmem %s5, %s261
        %p263 = scmp.lt.s32.totalorder %s24, 1
        %s264 = scalar_select %p263, %s24, 1
        %s265 = smul.addr %s264, 2
        %s266 = smul.addr %s265, 8
        %s267 = scalar_lea.vmem %s5, %s266
        %s268 = sld [smem:[#allocation3]]
        %s269 = sld [smem:[#allocation3 + $0x1]]
        %v270 = vld [vmem:[%s230] sm:$0xff]
        %v271 = vld [vmem:[%s230 + $0x8] sm:$0xff]
        %v272 = vstv %s268
        %v273 = vmul.f32 %v270, %v272
        %v274 = vmul.f32 %v271, %v272
        %v275 = vmax.f32 %v273, -256.0
        %v276 = vmax.f32 %v274, -256.0
        %v277 = vmin.f32 %v275, 127.0
        %v278 = vmin.f32 %v276, 127.0
        %v279 = vld [vmem:[%s2] sm:$0xff]
        %v280 = vld [vmem:[%s3] sm:$0xff]
        %v283 = vcombine.high %v277, %v277
        %285 = vst [vmem:[#allocation2] sm:$0xf] %v277
        %286 = vst [vmem:[#allocation2 + $0x8] sm:$0xf] %v283
        %287 = vst [vmem:[#allocation2 + $0x10] sm:$0xf] %v278
        %v288 = vcombine.low %v277, %v277
        %v289 = vcombine.low %v278, %v278
        %290 = vrot.lane.b32.xlu0 %v288, 127
        %v291 = vpop.permute.xlu0 %290
        %292 = vrot.lane.b32.xlu0 %v277, 127
        %v293 = vpop.permute.xlu0 %292
        %294 = vrot.lane.b32.xlu0 %v289, 127
        %v295 = vpop.permute.xlu0 %294
        %296 = vrot.lane.b32.xlu0 %v278, 127
        %v297 = vpop.permute.xlu0 %296
        %vm298 = vcmask 1039360
        %v299 = vsel %vm298, %v291, %v293
        %v300 = vsel %vm298, %v293, %v295
        %v301 = vsel %vm298, %v295, %v297
        %305 = vst [vmem:[#allocation2] sm:$0xf0] %v299
        %306 = vst [vmem:[#allocation2 + $0x8] sm:$0xf0] %v300
        %307 = vst [vmem:[#allocation2 + $0x10] sm:$0xf0] %v301
        %v308 = vcombine.high %v278, %v278
        %309 = vrot.lane.b32.xlu0 %v277, 126
        %v310 = vpop.permute.xlu0 %309
        %311 = vrot.lane.b32.xlu0 %v283, 126
        %v312 = vpop.permute.xlu0 %311
        %313 = vrot.lane.b32.xlu0 %v278, 126
        %v314 = vpop.permute.xlu0 %313
        %315 = vrot.lane.b32.xlu0 %v308, 126
        %v316 = vpop.permute.xlu0 %315
        %vm317 = vcmask 1031168
        %v318 = vsel %vm317, %v310, %v312
        %v319 = vsel %vm317, %v312, %v314
        %v320 = vsel %vm317, %v314, %v316
        %324 = vst [vmem:[#allocation2 + $0x18] sm:$0xf] %v318
        %325 = vst [vmem:[#allocation2 + $0x20] sm:$0xf] %v319
        %326 = vst [vmem:[#allocation2 + $0x28] sm:$0xf] %v320
        %327 = vrot.lane.b32.xlu0 %v288, 110
        %v328 = vpop.permute.xlu0 %327
        %329 = vrot.lane.b32.xlu0 %v277, 110
        %v330 = vpop.permute.xlu0 %329
        %331 = vrot.lane.b32.xlu0 %v289, 110
        %v332 = vpop.permute.xlu0 %331
        %333 = vrot.lane.b32.xlu0 %v278, 110
        %v334 = vpop.permute.xlu0 %333
        %vm335 = vcmask 900096
        %v336 = vsel %vm335, %v328, %v330
        %v337 = vsel %vm335, %v330, %v332
        %v338 = vsel %vm335, %v332, %v334
        %342 = vst [vmem:[#allocation2 + $0x18] sm:$0xf0] %v336
        %343 = vst [vmem:[#allocation2 + $0x20] sm:$0xf0] %v337
        %344 = vst [vmem:[#allocation2 + $0x28] sm:$0xf0] %v338
        %345 = vrot.lane.b32.xlu0 %v277, 109
        %v346 = vpop.permute.xlu0 %345
        %347 = vrot.lane.b32.xlu0 %v283, 109
        %v348 = vpop.permute.xlu0 %347
        %349 = vrot.lane.b32.xlu0 %v278, 109
        %v350 = vpop.permute.xlu0 %349
        %351 = vrot.lane.b32.xlu0 %v308, 109
        %v352 = vpop.permute.xlu0 %351
        %vm353 = vcmask 891904
        %v354 = vsel %vm353, %v346, %v348
        %v355 = vsel %vm353, %v348, %v350
        %v356 = vsel %vm353, %v350, %v352
        %360 = vst [vmem:[#allocation2 + $0x30] sm:$0xf] %v354
        %361 = vst [vmem:[#allocation2 + $0x38] sm:$0xf] %v355
        %362 = vst [vmem:[#allocation2 + $0x40] sm:$0xf] %v356
        %363 = vrot.lane.b32.xlu0 %v288, 108
        %v364 = vpop.permute.xlu0 %363
        %365 = vrot.lane.b32.xlu0 %v277, 108
        %v366 = vpop.permute.xlu0 %365
        %367 = vrot.lane.b32.xlu0 %v289, 108
        %v368 = vpop.permute.xlu0 %367
        %369 = vrot.lane.b32.xlu0 %v278, 108
        %v370 = vpop.permute.xlu0 %369
        %vm371 = vcmask 883712
        %v372 = vsel %vm371, %v364, %v366
        %v373 = vsel %vm371, %v366, %v368
        %v374 = vsel %vm371, %v368, %v370
        %378 = vst [vmem:[#allocation2 + $0x30] sm:$0xf0] %v372
        %379 = vst [vmem:[#allocation2 + $0x38] sm:$0xf0] %v373
        %380 = vst [vmem:[#allocation2 + $0x40] sm:$0xf0] %v374
        %381 = vrot.lane.b32.xlu0 %v277, 92
        %v382 = vpop.permute.xlu0 %381
        %383 = vrot.lane.b32.xlu0 %v283, 92
        %v384 = vpop.permute.xlu0 %383
        %385 = vrot.lane.b32.xlu0 %v278, 92
        %v386 = vpop.permute.xlu0 %385
        %387 = vrot.lane.b32.xlu0 %v308, 92
        %v388 = vpop.permute.xlu0 %387
        %vm389 = vcmask 752640
        %v390 = vsel %vm389, %v382, %v384
        %v391 = vsel %vm389, %v384, %v386
        %v392 = vsel %vm389, %v386, %v388
        %396 = vst [vmem:[#allocation2 + $0x48] sm:$0xf] %v390
        %397 = vst [vmem:[#allocation2 + $0x50] sm:$0xf] %v391
        %398 = vst [vmem:[#allocation2 + $0x58] sm:$0xf] %v392
        %399 = vrot.lane.b32.xlu0 %v288, 91
        %v400 = vpop.permute.xlu0 %399
        %401 = vrot.lane.b32.xlu0 %v277, 91
        %v402 = vpop.permute.xlu0 %401
        %403 = vrot.lane.b32.xlu0 %v289, 91
        %v404 = vpop.permute.xlu0 %403
        %405 = vrot.lane.b32.xlu0 %v278, 91
        %v406 = vpop.permute.xlu0 %405
        %vm407 = vcmask 744448
        %v408 = vsel %vm407, %v400, %v402
        %v409 = vsel %vm407, %v402, %v404
        %v410 = vsel %vm407, %v404, %v406
        %414 = vst [vmem:[#allocation2 + $0x48] sm:$0xf0] %v408
        %415 = vst [vmem:[#allocation2 + $0x50] sm:$0xf0] %v409
        %416 = vst [vmem:[#allocation2 + $0x58] sm:$0xf0] %v410
        %417 = vrot.lane.b32.xlu0 %v277, 90
        %v418 = vpop.permute.xlu0 %417
        %419 = vrot.lane.b32.xlu0 %v283, 90
        %v420 = vpop.permute.xlu0 %419
        %421 = vrot.lane.b32.xlu0 %v278, 90
        %v422 = vpop.permute.xlu0 %421
        %423 = vrot.lane.b32.xlu0 %v308, 90
        %v424 = vpop.permute.xlu0 %423
        %vm425 = vcmask 736256
        %v426 = vsel %vm425, %v418, %v420
        %v427 = vsel %vm425, %v420, %v422
        %v428 = vsel %vm425, %v422, %v424
        %432 = vst [vmem:[#allocation2 + $0x60] sm:$0xf] %v426
        %433 = vst [vmem:[#allocation2 + $0x68] sm:$0xf] %v427
        %434 = vst [vmem:[#allocation2 + $0x70] sm:$0xf] %v428
        %v435 = vld [vmem:[#allocation2] sm:$0xff]
        %v436 = vld [vmem:[#allocation2 + $0x8] sm:$0xff]
        %v437 = vld [vmem:[#allocation2 + $0x10] sm:$0xff]
        %v438 = vld [vmem:[#allocation2 + $0x18] sm:$0xff]
        %v439 = vld [vmem:[#allocation2 + $0x20] sm:$0xff]
        %v440 = vld [vmem:[#allocation2 + $0x28] sm:$0xff]
        %v441 = vld [vmem:[#allocation2 + $0x30] sm:$0xff]
        %v442 = vld [vmem:[#allocation2 + $0x38] sm:$0xff]
        %v443 = vld [vmem:[#allocation2 + $0x40] sm:$0xff]
        %v444 = vld [vmem:[#allocation2 + $0x48] sm:$0xff]
        %v445 = vld [vmem:[#allocation2 + $0x50] sm:$0xff]
        %v446 = vld [vmem:[#allocation2 + $0x58] sm:$0xff]
        %v447 = vld [vmem:[#allocation2 + $0x60] sm:$0xf]
        %v448 = vld [vmem:[#allocation2 + $0x68] sm:$0xf]
        %v449 = vld [vmem:[#allocation2 + $0x70] sm:$0xf]
        %vm450 = vcmask 293888
        %v452 = vsel %vm450, %v279, 0
        %vm454 = vcmask 1043456
        %v456 = vsel %vm454, %v447, 0
        %v459 = vsel %vm454, %v448, 0
        %v462 = vsel %vm454, %v449, 0
        %464 = vmatprep.subr.mxu0 %v436
        %465 = vmatpush1.msra.mxu0 %v435
        %466 = vmatprep.subr.mxu0 %v439
        %467 = vmatpush1.msra.mxu0 %v438
        %468 = vmatprep.subr.mxu0 %v442
        %469 = vmatpush1.msra.mxu0 %v441
        %470 = vmatprep.subr.mxu0 %v445
        %471 = vmatpush1.msra.mxu0 %v444
        %472 = vmatprep.subr.mxu0 %v459
        %473 = vmatpush1.msra.mxu0 %v456
        %474 = vmatprep.subr.mxu0 0.0
        %475 = vmatpush1.msra.mxu0 0.0
        %476 = vmatprep.subr.mxu0 0.0
        %477 = vmatpush1.msra.mxu0 0.0
        %478 = vmatprep.subr.mxu0 0.0
        %479 = vmatpush1.msra.mxu0 0.0
        %480 = vmatprep.subr.mxu0 0.0
        %481 = vmatpush1.msra.mxu0 0.0
        %482 = vmatprep.subr.mxu0 0.0
        %483 = vmatpush1.msra.mxu0 0.0
        %484 = vmatprep.subr.mxu0 0.0
        %485 = vmatpush1.msra.mxu0 0.0
        %486 = vmatprep.subr.mxu0 0.0
        %487 = vmatpush1.msra.mxu0 0.0
        %488 = vmatprep.subr.mxu0 0.0
        %489 = vmatpush1.msra.mxu0 0.0
        %490 = vmatprep.subr.mxu0 0.0
        %491 = vmatpush1.msra.mxu0 0.0
        %492 = vmatprep.subr.mxu0 0.0
        %493 = vmatpush1.msra.mxu0 0.0
        %494 = vmatprep.subr.mxu0 0.0
        %495 = vmatpush1.msra.mxu0 0.0
        %496 = vmatprep.subr.mxu0 0.0
        %497 = vmatpush1.msra.mxu0 0.0
        %498 = vmatprep.subr.mxu0 0.0
        %499 = vmatpush1.msra.mxu0 0.0
        %500 = vmatprep.subr.mxu0 0.0
        %501 = vmatpush1.msra.mxu0 0.0
        %502 = vmatprep.subr.mxu0 0.0
        %503 = vmatpush1.msra.mxu0 0.0
        %504 = vmatprep.subr.mxu0 0.0
        %505 = vmatpush1.msra.mxu0 0.0
        %506 = vmatprep.subr.mxu0 0.0
        %507 = vmatpush1.msra.mxu0 0.0
        %508 = vmatprep.subr.mxu0 0.0
        %509 = vmatpush1.msra.mxu0 0.0
        %510 = vmatprep.subr.mxu0 0.0
        %511 = vmatpush1.msra.mxu0 0.0
        %512 = vmatprep.subr.mxu0 0.0
        %513 = vmatpush1.msra.mxu0 0.0
        %514 = vmatprep.subr.mxu0 0.0
        %515 = vmatpush1.msra.mxu0 0.0
        %516 = vmatprep.subr.mxu0 0.0
        %517 = vmatpush1.msra.mxu0 0.0
        %518 = vmatprep.subr.mxu0 0.0
        %519 = vmatpush1.msra.mxu0 0.0
        %520 = vmatprep.subr.mxu0 0.0
        %521 = vmatpush1.msra.mxu0 0.0
        %522 = vmatprep.subr.mxu0 0.0
        %523 = vmatpush1.msra.mxu0 0.0
        %524 = vmatprep.subr.mxu0 0.0
        %525 = vmatpush1.msra.mxu0 0.0
        %526 = vmatprep.subr.mxu0 0.0
        %527 = vmatpush1.msra.mxu0 0.0
        %528 = vmatprep.mubr.f32.mxu0 0.0
        %529 = vmatmul.mubr.f32.gmra.mrb[0].mxu0 %v452
        %v530 = vpop.f32.mrb[0].mxu0
        %v531 = vadd.f32 0.0, %v530
        %v532 = vpop.f32.mrb[0].mxu0
        %v533 = vadd.f32 0.0, %v532
        %534 = vdwg.mxu0
        %535 = vmatprep.subr.mxu0 0.0
        %536 = vmatpush1.msra.mxu0 %v437
        %537 = vmatprep.subr.mxu0 0.0
        %538 = vmatpush1.msra.mxu0 %v440
        %539 = vmatprep.subr.mxu0 0.0
        %540 = vmatpush1.msra.mxu0 %v443
        %541 = vmatprep.subr.mxu0 0.0
        %542 = vmatpush1.msra.mxu0 %v446
        %543 = vmatprep.subr.mxu0 0.0
        %544 = vmatpush1.msra.mxu0 %v462
        %545 = vmatprep.subr.mxu0 0.0
        %546 = vmatpush1.msra.mxu0 0.0
        %547 = vmatprep.subr.mxu0 0.0
        %548 = vmatpush1.msra.mxu0 0.0
        %549 = vmatprep.subr.mxu0 0.0
        %550 = vmatpush1.msra.mxu0 0.0
        %551 = vmatprep.subr.mxu0 0.0
        %552 = vmatpush1.msra.mxu0 0.0
        %553 = vmatprep.subr.mxu0 0.0
        %554 = vmatpush1.msra.mxu0 0.0
        %555 = vmatprep.subr.mxu0 0.0
        %556 = vmatpush1.msra.mxu0 0.0
        %557 = vmatprep.subr.mxu0 0.0
        %558 = vmatpush1.msra.mxu0 0.0
        %559 = vmatprep.subr.mxu0 0.0
        %560 = vmatpush1.msra.mxu0 0.0
        %561 = vmatprep.subr.mxu0 0.0
        %562 = vmatpush1.msra.mxu0 0.0
        %563 = vmatprep.subr.mxu0 0.0
        %564 = vmatpush1.msra.mxu0 0.0
        %565 = vmatprep.subr.mxu0 0.0
        %566 = vmatpush1.msra.mxu0 0.0
        %567 = vmatprep.subr.mxu0 0.0
        %568 = vmatpush1.msra.mxu0 0.0
        %569 = vmatprep.subr.mxu0 0.0
        %570 = vmatpush1.msra.mxu0 0.0
        %571 = vmatprep.subr.mxu0 0.0
        %572 = vmatpush1.msra.mxu0 0.0
        %573 = vmatprep.subr.mxu0 0.0
        %574 = vmatpush1.msra.mxu0 0.0
        %575 = vmatprep.subr.mxu0 0.0
        %576 = vmatpush1.msra.mxu0 0.0
        %577 = vmatprep.subr.mxu0 0.0
        %578 = vmatpush1.msra.mxu0 0.0
        %579 = vmatprep.subr.mxu0 0.0
        %580 = vmatpush1.msra.mxu0 0.0
        %581 = vmatprep.subr.mxu0 0.0
        %582 = vmatpush1.msra.mxu0 0.0
        %583 = vmatprep.subr.mxu0 0.0
        %584 = vmatpush1.msra.mxu0 0.0
        %585 = vmatprep.subr.mxu0 0.0
        %586 = vmatpush1.msra.mxu0 0.0
        %587 = vmatprep.subr.mxu0 0.0
        %588 = vmatpush1.msra.mxu0 0.0
        %589 = vmatprep.subr.mxu0 0.0
        %590 = vmatpush1.msra.mxu0 0.0
        %591 = vmatprep.subr.mxu0 0.0
        %592 = vmatpush1.msra.mxu0 0.0
        %593 = vmatprep.subr.mxu0 0.0
        %594 = vmatpush1.msra.mxu0 0.0
        %595 = vmatprep.subr.mxu0 0.0
        %596 = vmatpush1.msra.mxu0 0.0
        %597 = vmatprep.subr.mxu0 0.0
        %598 = vmatpush1.msra.mxu0 0.0
        %599 = vmatprep.mubr.f32.mxu0 0.0
        %600 = vmatmul.mubr.f32.gmra.mrb[0].mxu0 %v452
        %v601 = vpop.f32.mrb[0].mxu0
        %v602 = vadd.f32 0.0, %v601
        %v603 = vpop.f32.mrb[0].mxu0
        %604 = vdwg.mxu0
        %v605 = vstv %s269
        %v606 = vmul.f32 %v531, %v605
        %v607 = vmul.f32 %v533, %v605
        %v608 = vmul.f32 %v602, %v605
        %610 = vset.pattern.permute.xlu0 0
        %611 = vperm.xlu0 %610, %v280
        %v612 = vpop.permute.xlu0 %611
        %v614 = vadd.f32 %v606, %v612
        %v615 = vadd.f32 %v607, %v612
        %v616 = vadd.f32 %v608, %v612
        %617 = vst [vmem:[%s255] sm:$0xff] %v614
        %618 = vst [vmem:[%s255 + $0x8] sm:$0xff] %v615
        %619 = vst [vmem:[%s255 + $0x10] sm:$0xff] %v616
        %v620 = vlaneseq
        %v621 = vand.u32 %v620, 127
        %v622 = vadd.s32 %v621, 128
        %v623 = vadd.s32 %v621, 256
        %vm624 = vcmp.lt.s32.totalorder %v621, 0
        %v625 = vsub.s32 0, %v621
        %v626 = vsel %vm624, %v625, %v621
        %v627 = vmul.u32.u64.compose %v626, 3817748708
        %v628 = vextract.low.u32 %v627
        %v629 = vextract.high.u32 %v627
        %v630 = vshrl.u32 %v629, 4
        %v631 = vmul.u32 %v630, 18
        %v632 = vsub.s32 %v626, %v631
        %v633 = vsub.s32 0, %v632
        %v634 = vsel %vm624, %v633, %v632
        %vm635 = vcmp.lt.s32.totalorder %v622, 0
        %v636 = vsub.s32 0, %v622
        %v637 = vsel %vm635, %v636, %v622
        %v638 = vmul.u32.u64.compose %v637, 3817748708
        %v639 = vextract.low.u32 %v638
        %v640 = vextract.high.u32 %v638
        %v641 = vshrl.u32 %v640, 4
        %v642 = vmul.u32 %v641, 18
        %v643 = vsub.s32 %v637, %v642
        %v644 = vsub.s32 0, %v643
        %v645 = vsel %vm635, %v644, %v643
        %vm646 = vcmp.lt.s32.totalorder %v623, 0
        %v647 = vsub.s32 0, %v623
        %v648 = vsel %vm646, %v647, %v623
        %v649 = vmul.u32.u64.compose %v648, 3817748708
        %v650 = vextract.low.u32 %v649
        %v651 = vextract.high.u32 %v649
        %v652 = vshrl.u32 %v651, 4
        %v653 = vmul.u32 %v652, 18
        %v654 = vsub.s32 %v648, %v653
        %v655 = vsub.s32 0, %v654
        %v656 = vsel %vm646, %v655, %v654
        %vm657 = vcmp.ne.s32.totalorder %v634, 0
        %vm658 = vcmp.ne.s32.totalorder %v645, 0
        %vm659 = vcmp.ne.s32.totalorder %v656, 0
        %vm660 = vcmp.lt.s32.totalorder %v634, 0
        %vm661 = vcmp.lt.s32.totalorder %v645, 0
        %vm662 = vcmp.lt.s32.totalorder %v656, 0
        %vm663 = vmand %vm660, %vm657
        %vm664 = vmand %vm661, %vm658
        %vm665 = vmand %vm662, %vm659
        %v666 = vadd.s32 %v634, 18
        %v667 = vadd.s32 %v645, 18
        %v668 = vadd.s32 %v656, 18
        %v669 = vsel %vm663, %v666, %v634
        %v670 = vsel %vm664, %v667, %v645
        %v671 = vsel %vm665, %v668, %v656
        %vm672 = vcmp.lt.s32.totalorder %v669, 16
        %vm673 = vcmp.lt.s32.totalorder %v670, 16
        %vm674 = vcmp.lt.s32.totalorder %v671, 16
        %vm675 = vcmp.lt.s32.totalorder %v621, 288
        %vm676 = vcmp.lt.s32.totalorder %v622, 288
        %vm677 = vcmp.lt.s32.totalorder %v623, 288
        %vm678 = vmand %vm672, %vm675
        %vm679 = vmand %vm673, %vm676
        %vm680 = vmand %vm674, %vm677
        %v681 = vsel %vm678, 1, 0
        %v682 = vsel %vm679, 1, 0
        %v683 = vsel %vm680, 1, 0
        %vm684 = vcmp.eq.s32.totalorder %v681, 1
        %vm685 = vcmp.eq.s32.totalorder %v682, 1
        %vm686 = vcmp.eq.s32.totalorder %v683, 1
        %v687 = vsel %vm684, %v614, inf
        %v688 = vsel %vm685, %v615, inf
        %v689 = vsel %vm686, %v616, inf
        %v690 = vmin.f32 %v687, %v688
        %v691 = vmin.f32 %v690, %v689
        %692 = vmin.xlane.f32.xlu0 %v691
        %v693 = vpop.xlane.xlu0 %692
        %v694 = vsel %vm684, %v614, -inf
        %v695 = vsel %vm685, %v615, -inf
        %v696 = vsel %vm686, %v616, -inf
        %v697 = vmax.f32 %v694, %v695
        %v698 = vmax.f32 %v697, %v696
        %699 = vmax.xlane.f32.xlu0 %v698
        %v700 = vpop.xlane.xlu0 %699
        %vm701 = vcmask 7168
        %702 = vst.msk [vmem:[%s267] sm:$0xff] %vm701, %v693
        %s703 = scalar_lea.vmem %s267, 8
        %704 = vst.msk [vmem:[%s703] sm:$0xff] %vm701, %v700
        %s705 = sand.u32 %s121, 1
        %s706 = scalar_lea.sflag [#allocation5], %s705
        %s707 = sand.u32 %s121, 1
        %s708 = smul.addr %s707, 24
        %s709 = scalar_lea.vmem [#allocation8], %s708
        %p710 = scmp.lt.s32.totalorder %s24, 1
        %s711 = scalar_select %p710, %s24, 1
        %s712 = smul.addr %s711, 2
        %s713 = smul.addr %s712, 8
        %s714 = scalar_lea.vmem %s5, %s713
        // Predicated region
        $region45: #{tpu_custom_call.1} parent=35 // pred_check
          %p715 = pneg %p131
        $region46: #{tpu_custom_call.1} parent=35 // pred_check_branch
          %717 = sbr.rel (%p715) target = $region48
        $region47: #{tpu_custom_call.1} parent=35 // pred_region
          %s719 = ssub.s32 384, 384
          %720 = vsyncadd %s706, %s719
          %s721 = smul.addr %s24, 3
          %s722 = smul.addr %s721, 128
          %s723 = scalar_lea.hbm %s4, %s722
          %s725 = sshll.u32 %s709, 4
          %s726 = int_to_ptr.vmem [resolvable:$true] %s725
          %728 = dma.vmem_to_hbm [thread:$0]  %s726, 384, %s723, %s706
        $region48: #{tpu_custom_call.1} parent=35 // pred_fallthru
          _
        // Predicated region
        $region49: #{tpu_custom_call.1} parent=35 // pred_check
          %p729 = pneg %p157
        $region50: #{tpu_custom_call.1} parent=35 // pred_check_branch
          %731 = sbr.rel (%p729) target = $region52
        $region51: #{tpu_custom_call.1} parent=35 // pred_region
          _
        $region52: #{tpu_custom_call.1} parent=35 // pred_fallthru
          _
      $region36: #{tpu_custom_call.1} parent=5 // pred_fallthru
        _
      %p732 = scmp.le.s32.totalorder 2, %s19
      // Predicated region
      $region53: #{tpu_custom_call.1} parent=5 // pred_check
        %p733 = pneg %p732
      $region54: #{tpu_custom_call.1} parent=5 // pred_check_branch
        %735 = sbr.rel (%p733) target = $region56
      $region55: #{tpu_custom_call.1} parent=5 // pred_region
        %s736 = ssub.s32 %s19, 2
        // Predicated region
        $region57: #{tpu_custom_call.1} parent=55 // pred_check
          %p737 = pneg %p137
        $region58: #{tpu_custom_call.1} parent=55 // pred_check_branch
          %739 = sbr.rel (%p737) target = $region60
        $region59: #{tpu_custom_call.1} parent=55 // pred_region
          %s740 = sand.u32 %s122, 1
          %s741 = scalar_lea.sflag [#allocation5], %s740
          %s742 = sand.u32 %s122, 1
          %s743 = smul.addr %s742, 24
          %s744 = scalar_lea.vmem [#allocation8], %s743
          %745 = dma.done %s741, 384
        $region60: #{tpu_custom_call.1} parent=55 // pred_fallthru
          _
        // Predicated region
        $region61: #{tpu_custom_call.1} parent=55 // pred_check
          %p746 = pneg %p163
        $region62: #{tpu_custom_call.1} parent=55 // pred_check_branch
          %748 = sbr.rel (%p746) target = $region64
        $region63: #{tpu_custom_call.1} parent=55 // pred_region
          %p749 = scmp.lt.s32.totalorder %s25, 1
          %s750 = scalar_select %p749, %s25, 1
          %s751 = smul.addr %s750, 2
          %s752 = smul.addr %s751, 8
          %s753 = scalar_lea.vmem %s5, %s752
        $region64: #{tpu_custom_call.1} parent=55 // pred_fallthru
          _
      $region56: #{tpu_custom_call.1} parent=5 // pred_fallthru
        _
    $region6: #{tpu_custom_call.1} parent=1 // loop_footer
      %s23 = sadd.s32 1, %s19
    $region7: #{tpu_custom_call.1} parent=1 // loop_footer_branch
      %18 = sbr.rel target = $region3
    $region8: #{tpu_custom_call.1} parent=1 // loop_exit
      _
    %754 = vsyncpa [#allocation4], 1
    %s755 = scalar_lea.sflag [#allocation4], 1
    %756 = vsyncpa %s755, 1
    %757 = vsyncpa [#allocation5], 1
    %s758 = scalar_lea.sflag [#allocation5], 1
    %759 = vsyncpa %s758, 1
    %760 = vsyncpa [#allocation6], 1
    %s761 = scalar_lea.sflag [#allocation6], 1
    %762 = vsyncpa %s761, 1

</llo_original>
